<compile_context>
chip_gen: v7x
topology: tpu7x:2x2x1
jax: 0.10.0
libtpu: 0.0.40
codegen_flags: <defaults>
</compile_context>

<pallas_src>
import functools
import math

import jax
import jax.numpy as jnp
from jax.experimental import pallas as pl
from jax.experimental.pallas import tpu as pltpu


def _to_2tuple(v):
    if isinstance(v, (tuple, list)):
        assert len(v) == 2
        return tuple(int(e) for e in v)
    return (int(v), int(v))


def _get_pad_shape(input_shape, kernel_size, stride, dilation):
    """Mirrors AdaptivePadding.get_pad_shape (all-static Python math)."""
    input_h, input_w = input_shape
    kernel_h, kernel_w = kernel_size
    stride_h, stride_w = stride
    output_h = math.ceil(input_h / stride_h)
    output_w = math.ceil(input_w / stride_w)
    pad_h = max((output_h - 1) * stride_h + (kernel_h - 1) * dilation[0] + 1 - input_h, 0)
    pad_w = max((output_w - 1) * stride_w + (kernel_w - 1) * dilation[1] + 1 - input_w, 0)
    return pad_h, pad_w


# --------------------------------------------------------------------------
# Kernels. Each writes every output element exactly once (body + margins).
# --------------------------------------------------------------------------

def _pad_plane3d_kernel(x_ref, o_ref, *, h, w, pt, pb, pleft, pr):
    # x_ref: (bn, H, W)   o_ref: (bn, Hout, Wout). pads are static Python ints.
    bn = o_ref.shape[0]
    wout = o_ref.shape[2]
    dt = o_ref.dtype
    o_ref[:, pl.ds(pt, h), pl.ds(pleft, w)] = x_ref[...]
    if pt:
        o_ref[:, pl.ds(0, pt), :] = jnp.zeros((bn, pt, wout), dt)
    if pb:
        o_ref[:, pl.ds(pt + h, pb), :] = jnp.zeros((bn, pb, wout), dt)
    if pleft:
        o_ref[:, pl.ds(pt, h), pl.ds(0, pleft)] = jnp.zeros((bn, h, pleft), dt)
    if pr:
        o_ref[:, pl.ds(pt, h), pl.ds(pleft + w, pr)] = jnp.zeros((bn, h, pr), dt)


def _pad_plane2d_kernel(x_ref, o_ref, *, body, top, bottom):
    # pad_w == 0: planes flattened. x_ref: (bn, H*W)  o_ref: (bn, Hout*W).
    bn = o_ref.shape[0]
    dt = o_ref.dtype
    o_ref[:, pl.ds(top, body)] = x_ref[...]
    if top:
        o_ref[:, pl.ds(0, top)] = jnp.zeros((bn, top), dt)
    if bottom:
        o_ref[:, pl.ds(top + body, bottom)] = jnp.zeros((bn, bottom), dt)


def _pad_htiled_kernel(x_ref, o_ref, *, h, w, th, pleft, pr):
    # Large planes, pad_top == 0. x_ref: (1, th, W)  o_ref: (1, th, Wout).
    # Output rows >= H are pad rows: the (clamped) input block is masked to 0.
    bn = o_ref.shape[0]
    dt = o_ref.dtype
    j = pl.program_id(1)
    rows = j * th + jax.lax.broadcasted_iota(jnp.int32, (1, th, 1), 1)
    body = jnp.where(rows < h, x_ref[...], jnp.zeros_like(x_ref))
    o_ref[:, :, pl.ds(pleft, w)] = body
    if pleft:
        o_ref[:, :, pl.ds(0, pleft)] = jnp.zeros((bn, th, pleft), dt)
    if pr:
        o_ref[:, :, pl.ds(pleft + w, pr)] = jnp.zeros((bn, th, pr), dt)


# --------------------------------------------------------------------------
# Wrapper
# --------------------------------------------------------------------------

def adaptive_padding(x, *, kernel_size=1, stride=1, dilation=1, padding="corner",
                     _force_path=None, _step_budget_bytes=4 * 1024 * 1024):
    """x: (B, C, H, W) NCHW.  Returns the zero-padded (B, C, Hout, Wout) tensor."""
    assert padding in ("same", "corner")
    kernel_size = _to_2tuple(kernel_size)
    stride = _to_2tuple(stride)
    dilation = _to_2tuple(dilation)

    B, C, H, W = x.shape
    pad_h, pad_w = _get_pad_shape((H, W), kernel_size, stride, dilation)
    if pad_h == 0 and pad_w == 0:
        # PyTorch returns the input unchanged when no padding is required.
        return x

    if padding == "corner":
        pad_top, pad_left = 0, 0
    else:  # "same"
        pad_top, pad_left = pad_h // 2, pad_w // 2
    pad_bottom, pad_right = pad_h - pad_top, pad_w - pad_left
    Hout, Wout = H + pad_h, W + pad_w

    n = B * C
    dtype = x.dtype
    itemsize = jnp.dtype(dtype).itemsize
    sub = max(8, 32 // itemsize)      # sublane multiple: 8 f32, 16 bf16, 32 int8
    LANE = 128

    def rup(a, m):
        return -(-a // m) * m

    def tile3(bn, r, c):              # tiled VMEM bytes of a (bn, r, c) block
        return bn * rup(r, sub) * rup(c, LANE) * itemsize

    def tile2(bn, c):                 # tiled VMEM bytes of a (bn, c) block
        return rup(bn, sub) * rup(c, LANE) * itemsize

    SAFE_VMEM = 24 * 1024 * 1024      # headroom under the 32 MiB scoped limit
    VMEM_LIMIT = 32 * 1024 * 1024     # valid on v5e/v6e/v7x
    step_budget = _step_budget_bytes  # per-step (single-buffer) in+out target

    # ---- pick a path (footprint check uses tiled bytes x2 double-buffering) --
    if _force_path is not None:
        path = _force_path
    elif pad_w == 0 and 2 * (tile2(min(n, sub), H * W)
                             + tile2(min(n, sub), Hout * W)) <= SAFE_VMEM:
        path = "plane2d"
    elif 2 * (tile3(1, H, W) + tile3(1, Hout, Wout)) <= SAFE_VMEM:
        path = "plane3d"
    elif pad_top == 0 and 2 * (tile3(1, sub, W) + tile3(1, sub, Wout)) <= SAFE_VMEM:
        path = "htiled"
    else:
        # TODO(synk): Pallas path for "same"-mode pads of planes too large for a
        # full-plane VMEM block (needs an H-shifted gather); use XLA pad there.
        return jnp.pad(x, ((0, 0), (0, 0),
                           (pad_top, pad_bottom), (pad_left, pad_right)))

    params_1d = pltpu.CompilerParams(dimension_semantics=("parallel",),
                                     vmem_limit_bytes=VMEM_LIMIT)

    if path == "plane2d":
        assert pad_w == 0
        x2 = x.reshape(n, H * W)      # free view: rows contiguous when pad_w == 0
        per_plane = (rup(H * W, LANE) + rup(Hout * W, LANE)) * itemsize
        if n < sub:
            bn = n                    # full-extent block satisfies the (8,128) rule
        else:
            bn = max(1, step_budget // per_plane)
            if n >= 8:
                bn = min(bn, pl.cdiv(n, 8))   # >= 8 steps -> pipeline overlap
            if bn >= n:
                bn = n
            else:
                bn = max(sub, (bn // sub) * sub)  # sublane-multiple block rows
        kernel = functools.partial(_pad_plane2d_kernel, body=H * W,
                                   top=pad_top * W, bottom=pad_bottom * W)
        out = pl.pallas_call(
            kernel,
            out_shape=jax.ShapeDtypeStruct((n, Hout * W), dtype),
            grid_spec=pltpu.PrefetchScalarGridSpec(
                num_scalar_prefetch=0,
                grid=(pl.cdiv(n, bn),),
                in_specs=[pl.BlockSpec((bn, H * W), lambda i: (i, 0))],
                out_specs=pl.BlockSpec((bn, Hout * W), lambda i: (i, 0))),
            compiler_params=params_1d,
        )(x2)
        return out.reshape(B, C, Hout, Wout)

    if path == "plane3d":
        x3 = x.reshape(n, H, W)       # free view
        per_plane = tile3(1, H, W) + tile3(1, Hout, Wout)
        bn = max(1, step_budget // per_plane)
        if n >= 8:
            bn = min(bn, pl.cdiv(n, 8))       # >= 8 steps for DMA overlap
        bn = max(1, min(bn, n))
        kernel = functools.partial(_pad_plane3d_kernel, h=H, w=W,
                                   pt=pad_top, pb=pad_bottom,
                                   pleft=pad_left, pr=pad_right)
        out = pl.pallas_call(
            kernel,
            out_shape=jax.ShapeDtypeStruct((n, Hout, Wout), dtype),
            grid_spec=pltpu.PrefetchScalarGridSpec(
                num_scalar_prefetch=0,
                grid=(pl.cdiv(n, bn),),
                in_specs=[pl.BlockSpec((bn, H, W), lambda i: (i, 0, 0))],
                out_specs=pl.BlockSpec((bn, Hout, Wout), lambda i: (i, 0, 0))),
            compiler_params=params_1d,
        )(x3)
        return out.reshape(B, C, Hout, Wout)

    # ---- H-tiled path (large planes, pad_top == 0) --------------------------
    assert pad_top == 0, "H-tiled path requires zero top padding"
    x3 = x.reshape(n, H, W)
    per_row = (rup(W, LANE) + rup(Wout, LANE)) * itemsize
    th = max(sub, (step_budget // per_row // sub) * sub)
    th = min(th, rup(Hout, sub))
    h_in_blocks = pl.cdiv(H, th)
    kernel = functools.partial(_pad_htiled_kernel, h=H, w=W, th=th,
                               pleft=pad_left, pr=pad_right)
    out = pl.pallas_call(
        kernel,
        out_shape=jax.ShapeDtypeStruct((n, Hout, Wout), dtype),
        grid_spec=pltpu.PrefetchScalarGridSpec(
            num_scalar_prefetch=0,
            grid=(n, pl.cdiv(Hout, th)),
            in_specs=[pl.BlockSpec(
                (1, th, W),
                # Clamp so the input DMA stays in-bounds; pad rows are masked
                # to zero inside the kernel.
                lambda i, j: (i, jnp.minimum(j, h_in_blocks - 1), 0))],
            out_specs=pl.BlockSpec((1, th, Wout), lambda i, j: (i, j, 0))),
        compiler_params=pltpu.CompilerParams(
            dimension_semantics=("parallel", "parallel"),
            vmem_limit_bytes=VMEM_LIMIT),
    )(x3)
    return out.reshape(B, C, Hout, Wout)


# --------------------------------------------------------------------------
# Pure-JAX reference
# --------------------------------------------------------------------------

def _reference(x, *, kernel_size, stride, dilation, padding):
    kernel_size = _to_2tuple(kernel_size)
    stride = _to_2tuple(stride)
    dilation = _to_2tuple(dilation)
    B, C, H, W = x.shape
    pad_h, pad_w = _get_pad_shape((H, W), kernel_size, stride, dilation)
    if pad_h == 0 and pad_w == 0:
        return x
    if padding == "corner":
        pads = ((0, 0), (0, 0), (0, pad_h), (0, pad_w))
    else:
        pads = ((0, 0), (0, 0),
                (pad_h // 2, pad_h - pad_h // 2),
                (pad_w // 2, pad_w - pad_w // 2))
    return jnp.pad(x, pads)


if __name__ == "__main__":
    key = jax.random.PRNGKey(0)

    # 1) "corner" mode (module default): 15x17 -> 16x32 (bottom/right margins).
    x = jax.random.normal(key, (2, 4, 15, 17), dtype=jnp.float32)
    out = jax.block_until_ready(
        adaptive_padding(x, kernel_size=16, stride=16, dilation=1, padding="corner"))
    ref = _reference(x, kernel_size=16, stride=16, dilation=1, padding="corner")
    assert out.shape == (2, 4, 16, 32) and jnp.array_equal(out, ref)

    # 2) "same" mode with all four margins: 14x17 -> 16x32.
    x2 = jax.random.normal(key, (2, 4, 14, 17), dtype=jnp.float32)
    out2 = jax.block_until_ready(
        adaptive_padding(x2, kernel_size=16, stride=16, dilation=1, padding="same"))
    ref2 = _reference(x2, kernel_size=16, stride=16, dilation=1, padding="same")
    assert out2.shape == (2, 4, 16, 32) and jnp.array_equal(out2, ref2)

    # 3) pad_w == 0 -> lane-dense flattened path: 15x16 -> 16x16.
    x3 = jax.random.normal(key, (2, 4, 15, 16), dtype=jnp.float32)
    out3 = jax.block_until_ready(
        adaptive_padding(x3, kernel_size=16, stride=16, dilation=1, padding="corner"))
    ref3 = _reference(x3, kernel_size=16, stride=16, dilation=1, padding="corner")
    assert out3.shape == (2, 4, 16, 16) and jnp.array_equal(out3, ref3)

    # 4) H-tiled path (forced small so it is exercised at small shapes):
    #    10x17, kernel=8, stride=8, dilation=2 -> 23x31.
    x4 = jax.random.normal(key, (1, 2, 10, 17), dtype=jnp.float32)
    out4 = jax.block_until_ready(
        adaptive_padding(x4, kernel_size=8, stride=8, dilation=2, padding="corner",
                         _force_path="htiled", _step_budget_bytes=1))
    ref4 = _reference(x4, kernel_size=8, stride=8, dilation=2, padding="corner")
    assert out4.shape == (1, 2, 23, 31) and jnp.array_equal(out4, ref4)

    # 5) No-padding fast path: input already covered by the filter.
    x5 = jax.random.normal(key, (2, 4, 16, 32), dtype=jnp.float32)
    out5 = jax.block_until_ready(
        adaptive_padding(x5, kernel_size=16, stride=16, dilation=1, padding="corner"))
    assert out5.shape == x5.shape and jnp.array_equal(out5, x5)

    print("KERNEL_OK")
</pallas_src>

<mosaic_0001>
module attributes {stable_mosaic.version = 11 : i64} {
  func.func @_pad_plane3d_kernel(%arg0: i32, %arg1: memref<1x15x17xf32, #tpu.memory_space<vmem>>, %arg2: memref<1x16x32xf32, #tpu.memory_space<vmem>>) attributes {dimension_semantics = [#tpu.dimension_semantics<parallel>], iteration_bounds = array<i64: 8>, scalar_prefetch = 0 : i64, scratch_operands = 0 : i64, tpu.core_type = #tpu.core_type<tc>, window_params = [{transform_indices = @transform_0, window_bounds = array<i64: 1, 15, 17>}, {transform_indices = @transform_1, window_bounds = array<i64: 1, 16, 32>}]} {
    %c0 = arith.constant 0 : index
    %c0_0 = arith.constant 0 : index
    %c0_1 = arith.constant 0 : index
    %0 = vector.load %arg1[%c0, %c0_0, %c0_1] : memref<1x15x17xf32, #tpu.memory_space<vmem>>, vector<1x15x17xf32>
    %c0_2 = arith.constant 0 : index
    %c0_3 = arith.constant 0 : index
    %c0_4 = arith.constant 0 : index
    %1 = vector.load %arg2[%c0_2, %c0_3, %c0_4] : memref<1x16x32xf32, #tpu.memory_space<vmem>>, vector<1x15x17xf32>
    tpu.vector_store %arg2[%c0_2, %c0_3, %c0_4], %0 {strides = array<i32>} : memref<1x16x32xf32, #tpu.memory_space<vmem>>, vector<1x15x17xf32>,
    %cst = arith.constant 0.000000e+00 : f32
    %2 = vector.broadcast %cst : f32 to vector<1x1x32xf32>
    %c0_5 = arith.constant 0 : index
    %c15 = arith.constant 15 : index
    %c0_6 = arith.constant 0 : index
    %3 = vector.load %arg2[%c0_5, %c15, %c0_6] : memref<1x16x32xf32, #tpu.memory_space<vmem>>, vector<1x1x32xf32>
    tpu.vector_store %arg2[%c0_5, %c15, %c0_6], %2 {strides = array<i32>} : memref<1x16x32xf32, #tpu.memory_space<vmem>>, vector<1x1x32xf32>,
    %cst_7 = arith.constant 0.000000e+00 : f32
    %4 = vector.broadcast %cst_7 : f32 to vector<1x15x15xf32>
    %c0_8 = arith.constant 0 : index
    %c0_9 = arith.constant 0 : index
    %c17 = arith.constant 17 : index
    %5 = vector.load %arg2[%c0_8, %c0_9, %c17] : memref<1x16x32xf32, #tpu.memory_space<vmem>>, vector<1x15x15xf32>
    tpu.vector_store %arg2[%c0_8, %c0_9, %c17], %4 {strides = array<i32>} : memref<1x16x32xf32, #tpu.memory_space<vmem>>, vector<1x15x15xf32>,
    return
  }
  func.func @transform_0(%arg0: i32) -> (i32, i32, i32) {
    %c0_i32 = arith.constant 0 : i32
    %c0_i32_0 = arith.constant 0 : i32
    %c0_i32_1 = arith.constant 0 : i32
    return %arg0, %c0_i32, %c0_i32_0 : i32, i32, i32
  }
  func.func @transform_1(%arg0: i32) -> (i32, i32, i32) {
    %c0_i32 = arith.constant 0 : i32
    %c0_i32_0 = arith.constant 0 : i32
    %c0_i32_1 = arith.constant 0 : i32
    return %arg0, %c0_i32, %c0_i32_0 : i32, i32, i32
  }
}

</mosaic_0001>

<llo_original>
// kernel: tpu_custom_call.1
$region0: #{tpu_custom_call.1}
  #allocation0 [shape = 'u32[]', space=smem, size = 0x4, offset = 0x4, fixed_abs, tag = 'smem constant byte address 0x4 - core index']
  #allocation1 [shape = 'u32[144,128]{1,0:T(1,128)}', space=vmem, size = 0x12000, scoped, tag = 'internal scratch']
  %s0 = inlined_call_operand.vmem [shape: f32[8,15,17], index: 0, kind: input, shape index: {}]
  %s1 = inlined_call_operand.hbm [shape: f32[8,16,32], index: 1, kind: output, shape index: {}]
  %s2 = sld [smem:[#allocation0]]
  $region37: #{tpu_custom_call.1} parent=0
    _
  %s4 = ssub.s32 1, %s2
  %s5 = scalar_select 0, %s4, %s2
  $region1: #{tpu_custom_call.1} parent=0
    #allocation2 [shape = 'u8[16384]{0}', space=vmem, size = 0x4000, scoped, tag = 'output window, operand 0']
    #allocation3 [shape = 's32[2]{0}', space=sflag, size = 0x8, scoped, tag = 'scoped memory for tpu_custom_call.1']
    %6 = vsyncpa [#allocation3], 0
    %s7 = scalar_lea.sflag [#allocation3], 1
    %8 = vsyncpa %s7, 0
    loop: start=0, step=1, limit=10
    $region2: #{tpu_custom_call.1} parent=1 // loop_pre_header
      _
    $region3: #{tpu_custom_call.1} parent=1 // loop_header
      %s10 = sphi 0, %s14
      %p11 = scmp.ge.s32.totalorder %s10, 10
      %s20 = sphi 0, %s22
      %s23 = sphi 0, %s20
      %s24 = sphi 0, %s23
      %s40 = sphi 0, %s24
      %s46 = sphi 0, %s48
      %s49 = sphi 0, %s46
      %s50 = sphi 0, %s49
      %s66 = sphi 0, %s50
    $region4: #{tpu_custom_call.1} parent=1 // loop_header_branch
      %13 = sbr.rel (%p11) target = $region8
    $region5: #{tpu_custom_call.1} parent=1 // loop_body
      %s15 = ssub.s32 %s10, 1
      %s16 = ssub.s32 %s10, 2
      %s17 = sadd.s32 %s10, 1
      %s18 = ssub.s32 %s10, %s17
      %p19 = scmp.eq.s32.totalorder %s18, 0
      %s21 = sadd.s32 %s20, 1
      %s22 = scalar_select %p19, %s20, %s21
      %p25 = pneg %p19
      %p26 = scmp.eq.s32.totalorder %s10, 7
      %p27 = por %p25, %p26
      %p28 = scmp.ne.s32.totalorder %s20, %s23
      %p29 = scmp.eq.s32.totalorder %s10, 0
      %p30 = por %p28, %p29
      %p31 = scmp.ne.s32.totalorder %s20, %s23
      %p32 = scmp.eq.s32.totalorder %s15, 7
      %p33 = por %p31, %p32
      %p34 = scmp.ne.s32.totalorder %s23, %s24
      %p35 = scmp.eq.s32.totalorder %s15, 0
      %p36 = por %p34, %p35
      %p37 = scmp.ne.s32.totalorder %s23, %s24
      %p38 = scmp.eq.s32.totalorder %s16, 7
      %p39 = por %p37, %p38
      %p41 = scmp.ne.s32.totalorder %s24, %s40
      %p42 = scmp.eq.s32.totalorder %s16, 0
      %p43 = por %p41, %p42
      %s44 = ssub.s32 %s10, %s17
      %p45 = scmp.eq.s32.totalorder %s44, 0
      %s47 = sadd.s32 %s46, 1
      %s48 = scalar_select %p45, %s46, %s47
      %p51 = pneg %p45
      %p52 = scmp.eq.s32.totalorder %s10, 7
      %p53 = por %p51, %p52
      %p54 = scmp.ne.s32.totalorder %s46, %s49
      %p55 = scmp.eq.s32.totalorder %s10, 0
      %p56 = por %p54, %p55
      %p57 = scmp.ne.s32.totalorder %s46, %s49
      %p58 = scmp.eq.s32.totalorder %s15, 7
      %p59 = por %p57, %p58
      %p60 = scmp.ne.s32.totalorder %s49, %s50
      %p61 = scmp.eq.s32.totalorder %s15, 0
      %p62 = por %p60, %p61
      %p63 = scmp.ne.s32.totalorder %s49, %s50
      %p64 = scmp.eq.s32.totalorder %s16, 7
      %p65 = por %p63, %p64
      %p67 = scmp.ne.s32.totalorder %s50, %s66
      %p68 = scmp.eq.s32.totalorder %s16, 0
      %p69 = por %p67, %p68
      %p70 = scmp.le.s32.totalorder 1, %s10
      %p71 = scmp.lt.s32.totalorder %s10, 9
      %p72 = pnand %p70, %p71
      %p73 = pneg %p72
      // Predicated region
      $region9: #{tpu_custom_call.1} parent=5 // pred_check
        _
      $region10: #{tpu_custom_call.1} parent=5 // pred_check_branch
        %75 = sbr.rel (%p72) target = $region12
      $region11: #{tpu_custom_call.1} parent=5 // pred_region
        %s76 = ssub.s32 %s10, 1
      $region12: #{tpu_custom_call.1} parent=5 // pred_fallthru
        _
      %p77 = scmp.lt.s32.totalorder %s10, 8
      // Predicated region
      $region13: #{tpu_custom_call.1} parent=5 // pred_check
        %p78 = pneg %p77
      $region14: #{tpu_custom_call.1} parent=5 // pred_check_branch
        %80 = sbr.rel (%p78) target = $region16
      $region15: #{tpu_custom_call.1} parent=5 // pred_region
        // Predicated region
        $region17: #{tpu_custom_call.1} parent=15 // pred_check
          %p81 = pneg %p30
        $region18: #{tpu_custom_call.1} parent=15 // pred_check_branch
          %83 = sbr.rel (%p81) target = $region20
        $region19: #{tpu_custom_call.1} parent=15 // pred_region
          %p84 = scmp.lt.s32.totalorder %s10, 7
          %s85 = scalar_select %p84, %s10, 7
          %s86 = smul.addr %s85, 2
          %s87 = smul.addr %s86, 8
          %s88 = scalar_lea.vmem %s0, %s87
        $region20: #{tpu_custom_call.1} parent=15 // pred_fallthru
          _
      $region16: #{tpu_custom_call.1} parent=5 // pred_fallthru
        _
      %p89 = scmp.le.s32.totalorder 1, %s10
      %p90 = scmp.lt.s32.totalorder %s10, 9
      %p91 = pnand %p89, %p90
      %p92 = pneg %p91
      // Predicated region
      $region21: #{tpu_custom_call.1} parent=5 // pred_check
        _
      $region22: #{tpu_custom_call.1} parent=5 // pred_check_branch
        %94 = sbr.rel (%p91) target = $region24
      $region23: #{tpu_custom_call.1} parent=5 // pred_region
        %s95 = ssub.s32 %s10, 1
        %p96 = scmp.lt.s32.totalorder %s15, 7
        %s97 = scalar_select %p96, %s15, 7
        %s98 = smul.addr %s97, 2
        %s99 = smul.addr %s98, 8
        %s100 = scalar_lea.vmem %s0, %s99
        %p101 = pneg %p36
        %p102 = pneg %p33
        %p103 = pneg %p62
        %p104 = pneg %p59
        %s105 = sand.u32 %s49, 1
        %s106 = scalar_lea.sflag [#allocation3], %s105
        %s107 = sand.u32 %s49, 1
        %s108 = smul.addr %s107, 16
        %s109 = scalar_lea.vmem [#allocation2], %s108
        %p110 = scmp.lt.s32.totalorder %s15, 7
        %s111 = scalar_select %p110, %s15, 7
        %s112 = smul.addr %s111, 2
        %s113 = smul.addr %s112, 8
        %s114 = scalar_lea.vmem %s0, %s113
        %v115 = vld [vmem:[%s114] sm:$0xff]
        %v116 = vld [vmem:[%s114 + $0x8] sm:$0x7f]
        %vm117 = vcmask 138240
        %118 = vst.msk [vmem:[%s109] sm:$0xff] %vm117, %v115
        %vm119 = vcmask 137216
        %120 = vst.msk [vmem:[%s109 + $0x8] sm:$0x7f] %vm119, %v116
        %vm121 = vcmask 253952
        %122 = vst.msk [vmem:[%s109 + $0xf] sm:$0x1] %vm121, 0.0
        %vm123 = vcmask 261256
        %124 = vst.msk [vmem:[%s109] sm:$0xff] %vm123, 0.0
        %vm125 = vcmask 260232
        %126 = vst.msk [vmem:[%s109 + $0x8] sm:$0x7f] %vm125, 0.0
        %s127 = sand.u32 %s49, 1
        %s128 = scalar_lea.sflag [#allocation3], %s127
        %s129 = sand.u32 %s49, 1
        %s130 = smul.addr %s129, 16
        %s131 = scalar_lea.vmem [#allocation2], %s130
        // Predicated region
        $region25: #{tpu_custom_call.1} parent=23 // pred_check
          %p132 = pneg %p59
        $region26: #{tpu_custom_call.1} parent=23 // pred_check_branch
          %134 = sbr.rel (%p132) target = $region28
        $region27: #{tpu_custom_call.1} parent=23 // pred_region
          %s136 = ssub.s32 256, 256
          %137 = vsyncadd %s128, %s136
          %s138 = smul.addr %s15, 2
          %s139 = smul.addr %s138, 128
          %s140 = scalar_lea.hbm %s1, %s139
          %s141 = sshll.u32 %s131, 4
          %s142 = int_to_ptr.vmem [resolvable:$true] %s141
          %147 = dma.vmem_to_hbm [thread:$0]  %s142, 256, %s140, %s128, 128, 128, 8
        $region28: #{tpu_custom_call.1} parent=23 // pred_fallthru
          _
      $region24: #{tpu_custom_call.1} parent=5 // pred_fallthru
        _
      %p148 = scmp.le.s32.totalorder 2, %s10
      // Predicated region
      $region29: #{tpu_custom_call.1} parent=5 // pred_check
        %p149 = pneg %p148
      $region30: #{tpu_custom_call.1} parent=5 // pred_check_branch
        %151 = sbr.rel (%p149) target = $region32
      $region31: #{tpu_custom_call.1} parent=5 // pred_region
        %s152 = ssub.s32 %s10, 2
        // Predicated region
        $region33: #{tpu_custom_call.1} parent=31 // pred_check
          %p153 = pneg %p65
        $region34: #{tpu_custom_call.1} parent=31 // pred_check_branch
          %155 = sbr.rel (%p153) target = $region36
        $region35: #{tpu_custom_call.1} parent=31 // pred_region
          %s156 = sand.u32 %s50, 1
          %s157 = scalar_lea.sflag [#allocation3], %s156
          %s158 = sand.u32 %s50, 1
          %s159 = smul.addr %s158, 16
          %s160 = scalar_lea.vmem [#allocation2], %s159
          %161 = dma.done %s157, 256
        $region36: #{tpu_custom_call.1} parent=31 // pred_fallthru
          _
      $region32: #{tpu_custom_call.1} parent=5 // pred_fallthru
        _
    $region6: #{tpu_custom_call.1} parent=1 // loop_footer
      %s14 = sadd.s32 1, %s10
    $region7: #{tpu_custom_call.1} parent=1 // loop_footer_branch
      %9 = sbr.rel target = $region3
    $region8: #{tpu_custom_call.1} parent=1 // loop_exit
      _
    %162 = vsyncpa [#allocation3], 1
    %s163 = scalar_lea.sflag [#allocation3], 1
    %164 = vsyncpa %s163, 1

</llo_original>
